<compile_context>
chip_gen: v7x
topology: tpu7x:2x2x1
jax: 0.10.0
libtpu: 0.0.40
codegen_flags: <defaults>
</compile_context>

<pallas_src>
import functools

import jax
import jax.numpy as jnp
from jax import lax
from jax.experimental import pallas as pl
from jax.experimental.pallas import tpu as pltpu


# ----------------------------------------------------------------------------
# helpers
# ----------------------------------------------------------------------------
def _round_up(x: int, m: int) -> int:
    return ((x + m - 1) // m) * m


def _pick_tile(size: int, candidates) -> int:
    for c in candidates:
        if size % c == 0:
            return c
    return size


def _pad2d(x, rows: int, cols: int):
    r, c = x.shape
    if r == rows and c == cols:
        return x
    return jnp.pad(x, ((0, rows - r), (0, cols - c)))


# ----------------------------------------------------------------------------
# Pallas kernels
# ----------------------------------------------------------------------------
def _tower_kernel(x_ref, w1_ref, b1_ref, w2_ref, b2_ref, norm_ref, head_ref,
                  *, mxu_dtype, head_scale):
    """Fused Linear -> ReLU -> Linear -> L2-normalize for one batch tile.

    Outputs:
      norm_ref: f32 normalized embedding (returned to the user).
      head_ref: mxu-dtype copy, optionally pre-scaled by 1/temperature, consumed
                directly by the head matmul kernel (no casts / scaling there).
    """
    x = x_ref[...].astype(mxu_dtype)
    h = jnp.dot(x, w1_ref[...], preferred_element_type=jnp.float32) + b1_ref[...]
    h = jnp.maximum(h, 0.0)
    y = jnp.dot(h.astype(mxu_dtype), w2_ref[...],
                preferred_element_type=jnp.float32) + b2_ref[...]
    # F.normalize(p=2, dim=1): y / max(||y||_2, 1e-12) == y * rsqrt(max(sum(y*y), 1e-24))
    ssq = jnp.sum(y * y, axis=1, keepdims=True)
    y_n = y * lax.rsqrt(jnp.maximum(ssq, 1e-24))
    norm_ref[...] = y_n.astype(norm_ref.dtype)
    head_ref[...] = (y_n * head_scale).astype(head_ref.dtype)


def _logits_kernel(u_ref, i_ref, o_ref):
    """Pure tiled logits matmul: contract the last dims of both operands (no .T)."""
    o_ref[...] = lax.dot_general(
        u_ref[...], i_ref[...],
        dimension_numbers=(((1,), (1,)), ((), ())),
        preferred_element_type=jnp.float32).astype(o_ref.dtype)


# ----------------------------------------------------------------------------
# wrappers
# ----------------------------------------------------------------------------
def tower_forward(x, w1, b1, w2, b2, *, head_scale, mxu_dtype,
                  batch_pad_to, max_block_b=512):
    """Run one MLP tower with a fused L2-normalize epilogue, tiled over batch."""
    B, Fin = x.shape
    H = w1.shape[1]
    D = w2.shape[1]

    Fin_p = _round_up(Fin, 128)
    H_p = _round_up(H, 128)
    D_p = _round_up(D, 128)
    B_p = _round_up(B, batch_pad_to)
    tb = _pick_tile(B_p, [c for c in (512, 256, 128, 64, 32, 16, 8)
                          if c <= max_block_b])

    # exact zero padding -> identical math on the valid rows/cols
    x_p = _pad2d(x.astype(jnp.float32), B_p, Fin_p)
    w1_p = _pad2d(w1, Fin_p, H_p).astype(mxu_dtype)       # cast weights once here
    b1_p = _pad2d(b1.reshape(1, -1), 1, H_p).astype(jnp.float32)
    w2_p = _pad2d(w2, H_p, D_p).astype(mxu_dtype)
    b2_p = _pad2d(b2.reshape(1, -1), 1, D_p).astype(jnp.float32)

    kernel = functools.partial(_tower_kernel, mxu_dtype=mxu_dtype,
                               head_scale=head_scale)
    norm_p, head_p = pl.pallas_call(
        kernel,
        out_shape=(jax.ShapeDtypeStruct((B_p, D_p), jnp.float32),
                   jax.ShapeDtypeStruct((B_p, D_p), mxu_dtype)),
        grid=(B_p // tb,),
        in_specs=[
            pl.BlockSpec((tb, Fin_p), lambda i: (i, 0)),
            pl.BlockSpec((Fin_p, H_p), lambda i: (0, 0)),
            pl.BlockSpec((1, H_p), lambda i: (0, 0)),
            pl.BlockSpec((H_p, D_p), lambda i: (0, 0)),
            pl.BlockSpec((1, D_p), lambda i: (0, 0)),
        ],
        out_specs=(
            pl.BlockSpec((tb, D_p), lambda i: (i, 0)),
            pl.BlockSpec((tb, D_p), lambda i: (i, 0)),
        ),
        compiler_params=pltpu.CompilerParams(
            dimension_semantics=("parallel",)),
    )(x_p, w1_p, b1_p, w2_p, b2_p)
    return norm_p, head_p


def logits_matmul(u_head, i_head):
    """Tiled [Bu, Bi] similarity matmul over a 2-D parallel grid."""
    Bu_p, D_p = u_head.shape
    Bi_p, _ = i_head.shape
    tm = _pick_tile(Bu_p, (512, 256, 128, 64, 32, 16, 8))
    tn = _pick_tile(Bi_p, (512, 256, 128))
    # D_p kept as a single block (moderate embedding dims); a reduction grid axis
    # would be added here for very large D.
    return pl.pallas_call(
        _logits_kernel,
        out_shape=jax.ShapeDtypeStruct((Bu_p, Bi_p), jnp.float32),
        grid=(Bu_p // tm, Bi_p // tn),
        in_specs=[
            pl.BlockSpec((tm, D_p), lambda i, j: (i, 0)),
            pl.BlockSpec((tn, D_p), lambda i, j: (j, 0)),
        ],
        out_specs=pl.BlockSpec((tm, tn), lambda i, j: (i, j)),
        compiler_params=pltpu.CompilerParams(
            dimension_semantics=("parallel", "parallel")),
    )(u_head, i_head)


def two_tower_model(batch, params, temperature=0.1, mxu_dtype=jnp.bfloat16):
    Bu = batch["user_numerical_features"].shape[0]
    Bi = batch["item_numerical_features"].shape[0]
    D = params["user_w2"].shape[1]

    # categorical embedding gather is data-dependent -> plain-JAX glue
    cat_ids = batch["user_categorical_features"]
    cat_emb = [jnp.take(tbl, cat_ids[:, j], axis=0)
               for j, tbl in enumerate(params["user_cat_tables"])]
    # TODO(synk): splitting user_w1 row-wise per feature source inside the tower
    # kernel would avoid materializing this concat (saves one HBM pass).
    user_in = jnp.concatenate(cat_emb + [batch["user_numerical_features"]], axis=1)

    inv_temp = 1.0 / temperature

    # user tower: f32 normalized embedding + (1/T)-pre-scaled mxu-dtype copy
    user_n, user_head = tower_forward(
        user_in, params["user_w1"], params["user_b1"],
        params["user_w2"], params["user_b2"],
        head_scale=inv_temp, mxu_dtype=mxu_dtype, batch_pad_to=8)

    # item tower: item batch padded to 128 so the logits last dim is lane-dense
    item_n, item_head = tower_forward(
        batch["item_numerical_features"], params["item_w1"], params["item_b1"],
        params["item_w2"], params["item_b2"],
        head_scale=1.0, mxu_dtype=mxu_dtype, batch_pad_to=128)

    logits = logits_matmul(user_head, item_head)

    return {
        "logits": logits[:Bu, :Bi],
        "user_embedding": user_n[:Bu, :D],
        "item_embedding": item_n[:Bi, :D],
    }


# ----------------------------------------------------------------------------
# Main
# ----------------------------------------------------------------------------
if __name__ == "__main__":
    key = jax.random.PRNGKey(0)

    # small, deterministic shapes
    Bu, Bi = 8, 8            # user / item batch
    n_cat, vocab, cat_dim = 2, 16, 8
    user_num, item_num = 8, 16
    hidden, emb_dim = 32, 16
    temperature = 0.1

    keys = jax.random.split(key, 16)
    user_in_dim = n_cat * cat_dim + user_num

    params = {
        "user_cat_tables": [
            0.05 * jax.random.normal(keys[i], (vocab, cat_dim), jnp.float32)
            for i in range(n_cat)
        ],
        "user_w1": 0.1 * jax.random.normal(keys[4], (user_in_dim, hidden), jnp.float32),
        "user_b1": jnp.zeros((1, hidden), jnp.float32),
        "user_w2": 0.1 * jax.random.normal(keys[5], (hidden, emb_dim), jnp.float32),
        "user_b2": jnp.zeros((1, emb_dim), jnp.float32),
        "item_w1": 0.1 * jax.random.normal(keys[6], (item_num, hidden), jnp.float32),
        "item_b1": jnp.zeros((1, hidden), jnp.float32),
        "item_w2": 0.1 * jax.random.normal(keys[7], (hidden, emb_dim), jnp.float32),
        "item_b2": jnp.zeros((1, emb_dim), jnp.float32),
    }

    batch = {
        "user_categorical_features": jax.random.randint(
            keys[8], (Bu, n_cat), 0, vocab, dtype=jnp.int32),
        "user_numerical_features": jax.random.normal(keys[9], (Bu, user_num), jnp.float32),
        "item_numerical_features": jax.random.normal(keys[10], (Bi, item_num), jnp.float32),
    }

    # ---- run Pallas model (bf16 MXU inputs, f32 accumulation) ----
    out = jax.block_until_ready(two_tower_model(batch, params, temperature))

    # ---- plain-JAX references ----
    cat_emb = [jnp.take(tbl, batch["user_categorical_features"][:, j], axis=0)
               for j, tbl in enumerate(params["user_cat_tables"])]
    u_in = jnp.concatenate(cat_emb + [batch["user_numerical_features"]], axis=1)

    def ref_tower(x, w1, b1, w2, b2, cast):
        c = (lambda a: a.astype(jnp.bfloat16)) if cast else (lambda a: a)
        h = jnp.maximum(
            jnp.dot(c(x), c(w1), preferred_element_type=jnp.float32) + b1, 0.0)
        y = jnp.dot(c(h), c(w2), preferred_element_type=jnp.float32) + b2
        return y / jnp.maximum(jnp.linalg.norm(y, axis=1, keepdims=True), 1e-12)

    def ref_forward(cast):
        un = ref_tower(u_in, params["user_w1"], params["user_b1"],
                       params["user_w2"], params["user_b2"], cast)
        itn = ref_tower(batch["item_numerical_features"], params["item_w1"],
                        params["item_b1"], params["item_w2"], params["item_b2"], cast)
        if cast:
            u_s = (un * (1.0 / temperature)).astype(jnp.bfloat16)
            lg = jnp.dot(u_s, itn.astype(jnp.bfloat16).T,
                         preferred_element_type=jnp.float32)
        else:
            lg = un @ itn.T / temperature
        return lg, un, itn

    # 1) precision-matched (bf16 MXU inputs) reference for the default run
    lg_m, un_m, itn_m = ref_forward(cast=True)
    assert jnp.allclose(out["logits"], lg_m, atol=5e-2), "bf16 logits mismatch"
    assert jnp.allclose(out["user_embedding"], un_m, atol=5e-3), "bf16 user emb mismatch"
    assert jnp.allclose(out["item_embedding"], itn_m, atol=5e-3), "bf16 item emb mismatch"

    # 2) full-f32 kernel path vs. plain f32 reference (semantics check)
    out32 = jax.block_until_ready(
        two_tower_model(batch, params, temperature, mxu_dtype=jnp.float32))
    lg_r, un_r, itn_r = ref_forward(cast=False)
    assert jnp.allclose(out32["logits"], lg_r, atol=2e-3), "f32 logits mismatch"
    assert jnp.allclose(out32["user_embedding"], un_r, atol=1e-4), "f32 user emb mismatch"
    assert jnp.allclose(out32["item_embedding"], itn_r, atol=1e-4), "f32 item emb mismatch"

    # TODO(synk): compute_loss (BCE-with-logits over rating-mapped targets) is a
    # training-time host-side utility and is not part of the forward kernel.
    print("KERNEL_OK")
</pallas_src>

<mosaic_0001>
module attributes {stable_mosaic.version = 11 : i64} {
  func.func @_tower_kernel(%arg0: i32, %arg1: memref<8x128xf32, #tpu.memory_space<vmem>>, %arg2: memref<128x128xbf16, #tpu.memory_space<vmem>>, %arg3: memref<1x128xf32, #tpu.memory_space<vmem>>, %arg4: memref<128x128xbf16, #tpu.memory_space<vmem>>, %arg5: memref<1x128xf32, #tpu.memory_space<vmem>>, %arg6: memref<8x128xf32, #tpu.memory_space<vmem>>, %arg7: memref<8x128xbf16, #tpu.memory_space<vmem>>) attributes {dimension_semantics = [#tpu.dimension_semantics<parallel>], iteration_bounds = array<i64: 1>, scalar_prefetch = 0 : i64, scratch_operands = 0 : i64, tpu.core_type = #tpu.core_type<tc>, window_params = [{transform_indices = @transform_0, window_bounds = array<i64: 8, 128>}, {pipeline_mode = #tpu.pipeline_mode<synchronous>, transform_indices = @transform_1, window_bounds = array<i64: 128, 128>}, {pipeline_mode = #tpu.pipeline_mode<synchronous>, transform_indices = @transform_2, window_bounds = array<i64: 1, 128>}, {pipeline_mode = #tpu.pipeline_mode<synchronous>, transform_indices = @transform_3, window_bounds = array<i64: 128, 128>}, {pipeline_mode = #tpu.pipeline_mode<synchronous>, transform_indices = @transform_4, window_bounds = array<i64: 1, 128>}, {transform_indices = @transform_5, window_bounds = array<i64: 8, 128>}, {transform_indices = @transform_6, window_bounds = array<i64: 8, 128>}]} {
    %c0 = arith.constant 0 : index
    %c0_0 = arith.constant 0 : index
    %0 = vector.load %arg1[%c0, %c0_0] : memref<8x128xf32, #tpu.memory_space<vmem>>, vector<8x128xf32>
    %1 = arith.truncf %0 : vector<8x128xf32> to vector<8x128xbf16>
    %c0_1 = arith.constant 0 : index
    %c0_2 = arith.constant 0 : index
    %2 = vector.load %arg2[%c0_1, %c0_2] : memref<128x128xbf16, #tpu.memory_space<vmem>>, vector<128x128xbf16>
    %cst = arith.constant dense<0.000000e+00> : vector<8x128xf32>
    %3 = tpu.matmul %1, %2, %cst {dimension_numbers = #tpu.dot_dimension_numbers<[1], [0], [0], [1], [0, 0, 1, 1], [], []>} : vector<8x128xbf16>, vector<128x128xbf16>, vector<8x128xf32> -> vector<8x128xf32>
    %c0_3 = arith.constant 0 : index
    %c0_4 = arith.constant 0 : index
    %4 = vector.load %arg3[%c0_3, %c0_4] : memref<1x128xf32, #tpu.memory_space<vmem>>, vector<1x128xf32>
    %5 = vector.broadcast %4 : vector<1x128xf32> to vector<8x128xf32>
    %6 = arith.addf %3, %5 : vector<8x128xf32>
    %cst_5 = arith.constant 0.000000e+00 : f32
    %7 = vector.broadcast %cst_5 : f32 to vector<8x128xf32>
    %8 = arith.maximumf %6, %7 : vector<8x128xf32>
    %9 = arith.truncf %8 : vector<8x128xf32> to vector<8x128xbf16>
    %c0_6 = arith.constant 0 : index
    %c0_7 = arith.constant 0 : index
    %10 = vector.load %arg4[%c0_6, %c0_7] : memref<128x128xbf16, #tpu.memory_space<vmem>>, vector<128x128xbf16>
    %cst_8 = arith.constant dense<0.000000e+00> : vector<8x128xf32>
    %11 = tpu.matmul %9, %10, %cst_8 {dimension_numbers = #tpu.dot_dimension_numbers<[1], [0], [0], [1], [0, 0, 1, 1], [], []>} : vector<8x128xbf16>, vector<128x128xbf16>, vector<8x128xf32> -> vector<8x128xf32>
    %c0_9 = arith.constant 0 : index
    %c0_10 = arith.constant 0 : index
    %12 = vector.load %arg5[%c0_9, %c0_10] : memref<1x128xf32, #tpu.memory_space<vmem>>, vector<1x128xf32>
    %13 = vector.broadcast %12 : vector<1x128xf32> to vector<8x128xf32>
    %14 = arith.addf %11, %13 : vector<8x128xf32>
    %15 = arith.mulf %14, %14 : vector<8x128xf32>
    %cst_11 = arith.constant dense<0.000000e+00> : vector<8xf32>
    %16 = vector.multi_reduction <add>, %15, %cst_11 [1] : vector<8x128xf32> to vector<8xf32>
    %17 = vector.shape_cast %16 : vector<8xf32> to vector<8x1xf32>
    %cst_12 = arith.constant 1.000000e-24 : f32
    %18 = vector.broadcast %cst_12 : f32 to vector<8x1xf32>
    %19 = arith.maximumf %17, %18 : vector<8x1xf32>
    %20 = math.rsqrt %19 : vector<8x1xf32>
    %21 = vector.broadcast %20 : vector<8x1xf32> to vector<8x128xf32>
    %22 = arith.mulf %14, %21 : vector<8x128xf32>
    %c0_13 = arith.constant 0 : index
    %c0_14 = arith.constant 0 : index
    %23 = vector.load %arg6[%c0_13, %c0_14] : memref<8x128xf32, #tpu.memory_space<vmem>>, vector<8x128xf32>
    tpu.vector_store %arg6[%c0_13, %c0_14], %22 {strides = array<i32>} : memref<8x128xf32, #tpu.memory_space<vmem>>, vector<8x128xf32>,
    %cst_15 = arith.constant 1.000000e+01 : f32
    %24 = vector.broadcast %cst_15 : f32 to vector<8x128xf32>
    %25 = arith.mulf %22, %24 : vector<8x128xf32>
    %26 = arith.truncf %25 : vector<8x128xf32> to vector<8x128xbf16>
    %c0_16 = arith.constant 0 : index
    %c0_17 = arith.constant 0 : index
    %27 = vector.load %arg7[%c0_16, %c0_17] : memref<8x128xbf16, #tpu.memory_space<vmem>>, vector<8x128xbf16>
    tpu.vector_store %arg7[%c0_16, %c0_17], %26 {strides = array<i32>} : memref<8x128xbf16, #tpu.memory_space<vmem>>, vector<8x128xbf16>,
    return
  }
  func.func @transform_0(%arg0: i32) -> (i32, i32) {
    %c0_i32 = arith.constant 0 : i32
    %c0_i32_0 = arith.constant 0 : i32
    return %arg0, %c0_i32 : i32, i32
  }
  func.func @transform_1(%arg0: i32) -> (i32, i32) {
    %c0_i32 = arith.constant 0 : i32
    %c0_i32_0 = arith.constant 0 : i32
    %c0_i32_1 = arith.constant 0 : i32
    return %c0_i32, %c0_i32_0 : i32, i32
  }
  func.func @transform_2(%arg0: i32) -> (i32, i32) {
    %c0_i32 = arith.constant 0 : i32
    %c0_i32_0 = arith.constant 0 : i32
    %c0_i32_1 = arith.constant 0 : i32
    return %c0_i32, %c0_i32_0 : i32, i32
  }
  func.func @transform_3(%arg0: i32) -> (i32, i32) {
    %c0_i32 = arith.constant 0 : i32
    %c0_i32_0 = arith.constant 0 : i32
    %c0_i32_1 = arith.constant 0 : i32
    return %c0_i32, %c0_i32_0 : i32, i32
  }
  func.func @transform_4(%arg0: i32) -> (i32, i32) {
    %c0_i32 = arith.constant 0 : i32
    %c0_i32_0 = arith.constant 0 : i32
    %c0_i32_1 = arith.constant 0 : i32
    return %c0_i32, %c0_i32_0 : i32, i32
  }
  func.func @transform_5(%arg0: i32) -> (i32, i32) {
    %c0_i32 = arith.constant 0 : i32
    %c0_i32_0 = arith.constant 0 : i32
    return %arg0, %c0_i32 : i32, i32
  }
  func.func @transform_6(%arg0: i32) -> (i32, i32) {
    %c0_i32 = arith.constant 0 : i32
    %c0_i32_0 = arith.constant 0 : i32
    return %arg0, %c0_i32 : i32, i32
  }
}

</mosaic_0001>

<llo_original>
// kernel: tpu_custom_call.1
$region0: #{tpu_custom_call.1}
  #allocation0 [shape = 'u32[]', space=smem, size = 0x4, offset = 0x4, fixed_abs, tag = 'smem constant byte address 0x4 - core index']
  #allocation1 [shape = 'u32[144,128]{1,0:T(1,128)}', space=vmem, size = 0x12000, scoped, tag = 'internal scratch']
  %s0 = inlined_call_operand.hbm [shape: f32[8,128], index: 0, kind: input, shape index: {}]
  %s1 = inlined_call_operand.hbm [shape: bf16[128,128], index: 1, kind: input, shape index: {}]
  %s2 = inlined_call_operand.vmem [shape: f32[1,128], index: 2, kind: input, shape index: {}]
  %s3 = inlined_call_operand.hbm [shape: bf16[128,128], index: 3, kind: input, shape index: {}]
  %s4 = inlined_call_operand.vmem [shape: f32[1,128], index: 4, kind: input, shape index: {}]
  %s5 = inlined_call_operand.hbm [shape: f32[8,128], index: 5, kind: output, shape index: {0}]
  %s6 = inlined_call_operand.hbm [shape: bf16[8,128], index: 6, kind: output, shape index: {1}]
  %7 = xla_tuple %s5, %s6
  %s8 = sld [smem:[#allocation0]]
  $region50: #{tpu_custom_call.1} parent=0
    _
  %s10 = ssub.s32 1, %s8
  %s11 = scalar_select 0, %s10, %s8
  $region1: #{tpu_custom_call.1} parent=0
    #allocation2 [shape = 'u8[4096]{0}', space=vmem, size = 0x1000, scoped, tag = 'input window, operand 0, single buffered']
    #allocation3 [shape = 's32[1]{0}', space=sflag, size = 0x4, scoped, tag = 'scoped memory for tpu_custom_call.1']
    #allocation4 [shape = 's32[1]{0}', space=sflag, size = 0x4, scoped, tag = 'scoped memory for tpu_custom_call.1']
    #allocation5 [shape = 'u8[32768]{0}', space=vmem, size = 0x8000, scoped, tag = 'input window, operand 1, single buffered']
    #allocation6 [shape = 's32[1]{0}', space=sflag, size = 0x4, scoped, tag = 'scoped memory for tpu_custom_call.1']
    #allocation7 [shape = 'u8[32768]{0}', space=vmem, size = 0x8000, scoped, tag = 'input window, operand 3, single buffered']
    #allocation8 [shape = 'u8[4096]{0}', space=vmem, size = 0x1000, scoped, tag = 'output window, operand 0, single buffered']
    #allocation9 [shape = 'u8[2048]{0}', space=vmem, size = 0x800, scoped, tag = 'output window, operand 1, single buffered']
    #allocation10 [shape = 's32[1]{0}', space=sflag, size = 0x4, scoped, tag = 'scoped memory for tpu_custom_call.1']
    %12 = vsyncpa [#allocation3], 0
    %13 = vsyncpa [#allocation6], 0
    %14 = vsyncpa [#allocation4], 0
    %15 = vsyncpa [#allocation10], 0
    // Predicated region
    $region2: #{tpu_custom_call.1} parent=1 // pred_check
      _
    $region3: #{tpu_custom_call.1} parent=1 // pred_check_branch
      %17 = sbr.rel (0) target = $region5
    $region4: #{tpu_custom_call.1} parent=1 // pred_region
      %s19 = ssub.s32 128, 128
      %20 = vsyncadd [#allocation3], %s19
      %s22 = sshll.u32 [#allocation2], 4
      %s23 = int_to_ptr.vmem [resolvable:$true] %s22
      %25 = dma.hbm_to_vmem [thread:$0]  %s0, 128, %s23, [#allocation3]
    $region5: #{tpu_custom_call.1} parent=1 // pred_fallthru
      _
    // Predicated region
    $region6: #{tpu_custom_call.1} parent=1 // pred_check
      _
    $region7: #{tpu_custom_call.1} parent=1 // pred_check_branch
      %27 = sbr.rel (0) target = $region9
    $region8: #{tpu_custom_call.1} parent=1 // pred_region
      %s29 = ssub.s32 1024, 1024
      %30 = vsyncadd [#allocation6], %s29
      %s31 = sshll.u32 [#allocation5], 4
      %s32 = int_to_ptr.vmem [resolvable:$true] %s31
      %37 = dma.hbm_to_vmem [thread:$0]  %s1, 1024, %s32, [#allocation6], 64, 64, 4
    $region9: #{tpu_custom_call.1} parent=1 // pred_fallthru
      _
    // Predicated region
    $region10: #{tpu_custom_call.1} parent=1 // pred_check
      _
    $region11: #{tpu_custom_call.1} parent=1 // pred_check_branch
      %39 = sbr.rel (0) target = $region13
    $region12: #{tpu_custom_call.1} parent=1 // pred_region
      _
    $region13: #{tpu_custom_call.1} parent=1 // pred_fallthru
      _
    // Predicated region
    $region14: #{tpu_custom_call.1} parent=1 // pred_check
      _
    $region15: #{tpu_custom_call.1} parent=1 // pred_check_branch
      %41 = sbr.rel (0) target = $region17
    $region16: #{tpu_custom_call.1} parent=1 // pred_region
      %s43 = ssub.s32 1024, 1024
      %44 = vsyncadd [#allocation6], %s43
      %s45 = sshll.u32 [#allocation7], 4
      %s46 = int_to_ptr.vmem [resolvable:$true] %s45
      %51 = dma.hbm_to_vmem [thread:$0]  %s3, 1024, %s46, [#allocation6], 64, 64, 4
    $region17: #{tpu_custom_call.1} parent=1 // pred_fallthru
      _
    // Predicated region
    $region18: #{tpu_custom_call.1} parent=1 // pred_check
      _
    $region19: #{tpu_custom_call.1} parent=1 // pred_check_branch
      %53 = sbr.rel (0) target = $region21
    $region20: #{tpu_custom_call.1} parent=1 // pred_region
      _
    $region21: #{tpu_custom_call.1} parent=1 // pred_fallthru
      _
    // Predicated region
    $region22: #{tpu_custom_call.1} parent=1 // pred_check
      _
    $region23: #{tpu_custom_call.1} parent=1 // pred_check_branch
      %55 = sbr.rel (0) target = $region25
    $region24: #{tpu_custom_call.1} parent=1 // pred_region
      %56 = dma.done [#allocation3], 128
    $region25: #{tpu_custom_call.1} parent=1 // pred_fallthru
      _
    // Predicated region
    $region26: #{tpu_custom_call.1} parent=1 // pred_check
      _
    $region27: #{tpu_custom_call.1} parent=1 // pred_check_branch
      %58 = sbr.rel (0) target = $region29
    $region28: #{tpu_custom_call.1} parent=1 // pred_region
      %59 = dma.done [#allocation6], 1024
    $region29: #{tpu_custom_call.1} parent=1 // pred_fallthru
      _
    // Predicated region
    $region30: #{tpu_custom_call.1} parent=1 // pred_check
      _
    $region31: #{tpu_custom_call.1} parent=1 // pred_check_branch
      %61 = sbr.rel (0) target = $region33
    $region32: #{tpu_custom_call.1} parent=1 // pred_region
      %62 = dma.done [#allocation6], 1024
    $region33: #{tpu_custom_call.1} parent=1 // pred_fallthru
      _
    %v64 = vld [vmem:[#allocation2] sm:$0xff]
    %v65 = vpack.c.bf16 %v64, %v64
    %v66 = vld [vmem:[#allocation5] sm:$0xf]
    %v67 = vld [vmem:[#allocation5 + $0x4] sm:$0xf]
    %v68 = vld [vmem:[#allocation5 + $0x8] sm:$0xf]
    %v69 = vld [vmem:[#allocation5 + $0xc] sm:$0xf]
    %v70 = vld [vmem:[#allocation5 + $0x10] sm:$0xf]
    %v71 = vld [vmem:[#allocation5 + $0x14] sm:$0xf]
    %v72 = vld [vmem:[#allocation5 + $0x18] sm:$0xf]
    %v73 = vld [vmem:[#allocation5 + $0x1c] sm:$0xf]
    %v74 = vld [vmem:[#allocation5 + $0x20] sm:$0xf]
    %v75 = vld [vmem:[#allocation5 + $0x24] sm:$0xf]
    %v76 = vld [vmem:[#allocation5 + $0x28] sm:$0xf]
    %v77 = vld [vmem:[#allocation5 + $0x2c] sm:$0xf]
    %v78 = vld [vmem:[#allocation5 + $0x30] sm:$0xf]
    %v79 = vld [vmem:[#allocation5 + $0x34] sm:$0xf]
    %v80 = vld [vmem:[#allocation5 + $0x38] sm:$0xf]
    %v81 = vld [vmem:[#allocation5 + $0x3c] sm:$0xf]
    %v82 = vld [vmem:[%s2] sm:$0x1]
    %v84 = vlaneseq
    %v85 = vshrl.u32 %v84, 7
    %v86 = vsub.s32 0, %v85
    %v87 = vrot.slane %v82, %v86
    %v105 = vunpack.c.l.b16 %v66
    %v106 = vunpack.c.l.b16 %v67
    %v107 = vunpack.c.l.b16 %v68
    %v108 = vunpack.c.l.b16 %v69
    %v109 = vunpack.c.l.b16 %v70
    %v110 = vunpack.c.l.b16 %v71
    %v111 = vunpack.c.l.b16 %v72
    %v112 = vunpack.c.l.b16 %v73
    %v113 = vunpack.c.l.b16 %v74
    %v114 = vunpack.c.l.b16 %v75
    %v115 = vunpack.c.l.b16 %v76
    %v116 = vunpack.c.l.b16 %v77
    %v117 = vunpack.c.l.b16 %v78
    %v118 = vunpack.c.l.b16 %v79
    %v119 = vunpack.c.l.b16 %v80
    %v120 = vunpack.c.l.b16 %v81
    %v121 = vpack.c.b16 %v106, %v105
    %v122 = vpack.c.b16 %v108, %v107
    %v123 = vpack.c.b16 %v110, %v109
    %v124 = vpack.c.b16 %v112, %v111
    %v125 = vpack.c.b16 %v114, %v113
    %v126 = vpack.c.b16 %v116, %v115
    %v127 = vpack.c.b16 %v118, %v117
    %v128 = vpack.c.b16 %v120, %v119
    %137 = vmatprep.subr.bf16.mxu0 0
    %138 = vmatpush1.bf16.msra.mxu0 %v121
    %139 = vmatprep.subr.bf16.mxu0 0
    %140 = vmatpush1.bf16.msra.mxu0 %v122
    %141 = vmatprep.subr.bf16.mxu0 0
    %142 = vmatpush1.bf16.msra.mxu0 %v123
    %143 = vmatprep.subr.bf16.mxu0 0
    %144 = vmatpush1.bf16.msra.mxu0 %v124
    %145 = vmatprep.subr.bf16.mxu0 0
    %146 = vmatpush1.bf16.msra.mxu0 %v125
    %147 = vmatprep.subr.bf16.mxu0 0
    %148 = vmatpush1.bf16.msra.mxu0 %v126
    %149 = vmatprep.subr.bf16.mxu0 0
    %150 = vmatpush1.bf16.msra.mxu0 %v127
    %151 = vmatprep.subr.bf16.mxu0 0
    %152 = vmatpush1.bf16.msra.mxu0 %v128
    %153 = vmatprep.subr.bf16.mxu0 0
    %154 = vmatpush1.bf16.msra.mxu0 0
    %155 = vmatprep.subr.bf16.mxu0 0
    %156 = vmatpush1.bf16.msra.mxu0 0
    %157 = vmatprep.subr.bf16.mxu0 0
    %158 = vmatpush1.bf16.msra.mxu0 0
    %159 = vmatprep.subr.bf16.mxu0 0
    %160 = vmatpush1.bf16.msra.mxu0 0
    %161 = vmatprep.subr.bf16.mxu0 0
    %162 = vmatpush1.bf16.msra.mxu0 0
    %163 = vmatprep.subr.bf16.mxu0 0
    %164 = vmatpush1.bf16.msra.mxu0 0
    %165 = vmatprep.subr.bf16.mxu0 0
    %166 = vmatpush1.bf16.msra.mxu0 0
    %167 = vmatprep.subr.bf16.mxu0 0
    %168 = vmatpush1.bf16.msra.mxu0 0
    %169 = vmatprep.mubr.bf16.mxu0 0
    %170 = vmatmul.mubr.bf16.gmra.mrb[0].mxu0 %v65
    %v171 = vpop.f32.mrb[0].mxu0
    %v172 = vadd.f32 %v87, %v171
    %v173 = vpop.f32.mrb[0].mxu0
    %v174 = vpop.f32.mrb[0].mxu0
    %v175 = vpop.f32.mrb[0].mxu0
    %176 = vdwg.mxu0
    %v177 = vmax.f32 %v172, 0.0
    %v178 = vpack.c.bf16 %v177, %v177
    %v179 = vld [vmem:[#allocation7] sm:$0xf]
    %v180 = vld [vmem:[#allocation7 + $0x4] sm:$0xf]
    %v181 = vld [vmem:[#allocation7 + $0x8] sm:$0xf]
    %v182 = vld [vmem:[#allocation7 + $0xc] sm:$0xf]
    %v183 = vld [vmem:[#allocation7 + $0x10] sm:$0xf]
    %v184 = vld [vmem:[#allocation7 + $0x14] sm:$0xf]
    %v185 = vld [vmem:[#allocation7 + $0x18] sm:$0xf]
    %v186 = vld [vmem:[#allocation7 + $0x1c] sm:$0xf]
    %v187 = vld [vmem:[#allocation7 + $0x20] sm:$0xf]
    %v188 = vld [vmem:[#allocation7 + $0x24] sm:$0xf]
    %v189 = vld [vmem:[#allocation7 + $0x28] sm:$0xf]
    %v190 = vld [vmem:[#allocation7 + $0x2c] sm:$0xf]
    %v191 = vld [vmem:[#allocation7 + $0x30] sm:$0xf]
    %v192 = vld [vmem:[#allocation7 + $0x34] sm:$0xf]
    %v193 = vld [vmem:[#allocation7 + $0x38] sm:$0xf]
    %v194 = vld [vmem:[#allocation7 + $0x3c] sm:$0xf]
    %v195 = vld [vmem:[%s4] sm:$0x1]
    %v197 = vlaneseq
    %v198 = vshrl.u32 %v197, 7
    %v199 = vsub.s32 0, %v198
    %v200 = vrot.slane %v195, %v199
    %v218 = vunpack.c.l.b16 %v179
    %v219 = vunpack.c.l.b16 %v180
    %v220 = vunpack.c.l.b16 %v181
    %v221 = vunpack.c.l.b16 %v182
    %v222 = vunpack.c.l.b16 %v183
    %v223 = vunpack.c.l.b16 %v184
    %v224 = vunpack.c.l.b16 %v185
    %v225 = vunpack.c.l.b16 %v186
    %v226 = vunpack.c.l.b16 %v187
    %v227 = vunpack.c.l.b16 %v188
    %v228 = vunpack.c.l.b16 %v189
    %v229 = vunpack.c.l.b16 %v190
    %v230 = vunpack.c.l.b16 %v191
    %v231 = vunpack.c.l.b16 %v192
    %v232 = vunpack.c.l.b16 %v193
    %v233 = vunpack.c.l.b16 %v194
    %v234 = vpack.c.b16 %v219, %v218
    %v235 = vpack.c.b16 %v221, %v220
    %v236 = vpack.c.b16 %v223, %v222
    %v237 = vpack.c.b16 %v225, %v224
    %v238 = vpack.c.b16 %v227, %v226
    %v239 = vpack.c.b16 %v229, %v228
    %v240 = vpack.c.b16 %v231, %v230
    %v241 = vpack.c.b16 %v233, %v232
    %250 = vmatprep.subr.bf16.mxu0 0
    %251 = vmatpush1.bf16.msra.mxu0 %v234
    %252 = vmatprep.subr.bf16.mxu0 0
    %253 = vmatpush1.bf16.msra.mxu0 %v235
    %254 = vmatprep.subr.bf16.mxu0 0
    %255 = vmatpush1.bf16.msra.mxu0 %v236
    %256 = vmatprep.subr.bf16.mxu0 0
    %257 = vmatpush1.bf16.msra.mxu0 %v237
    %258 = vmatprep.subr.bf16.mxu0 0
    %259 = vmatpush1.bf16.msra.mxu0 %v238
    %260 = vmatprep.subr.bf16.mxu0 0
    %261 = vmatpush1.bf16.msra.mxu0 %v239
    %262 = vmatprep.subr.bf16.mxu0 0
    %263 = vmatpush1.bf16.msra.mxu0 %v240
    %264 = vmatprep.subr.bf16.mxu0 0
    %265 = vmatpush1.bf16.msra.mxu0 %v241
    %266 = vmatprep.subr.bf16.mxu0 0
    %267 = vmatpush1.bf16.msra.mxu0 0
    %268 = vmatprep.subr.bf16.mxu0 0
    %269 = vmatpush1.bf16.msra.mxu0 0
    %270 = vmatprep.subr.bf16.mxu0 0
    %271 = vmatpush1.bf16.msra.mxu0 0
    %272 = vmatprep.subr.bf16.mxu0 0
    %273 = vmatpush1.bf16.msra.mxu0 0
    %274 = vmatprep.subr.bf16.mxu0 0
    %275 = vmatpush1.bf16.msra.mxu0 0
    %276 = vmatprep.subr.bf16.mxu0 0
    %277 = vmatpush1.bf16.msra.mxu0 0
    %278 = vmatprep.subr.bf16.mxu0 0
    %279 = vmatpush1.bf16.msra.mxu0 0
    %280 = vmatprep.subr.bf16.mxu0 0
    %281 = vmatpush1.bf16.msra.mxu0 0
    %282 = vmatprep.mubr.bf16.mxu0 0
    %283 = vmatmul.mubr.bf16.gmra.mrb[0].mxu0 %v178
    %v284 = vpop.f32.mrb[0].mxu0
    %v285 = vadd.f32 %v200, %v284
    %v286 = vpop.f32.mrb[0].mxu0
    %v287 = vpop.f32.mrb[0].mxu0
    %v288 = vpop.f32.mrb[0].mxu0
    %289 = vdwg.mxu0
    %v290 = vmul.f32 %v285, %v285
    %291 = vadd.xlane.f32.xlu0 %v290
    %v292 = vpop.xlane.xlu0 %291
    %v293 = vmax.f32 %v292, 1e-24
    %v294 = vrsqrt.pop %v293
    %v295 = vmul.f32 %v285, %v294
    %296 = vst [vmem:[#allocation8] sm:$0xff] %v295
    %v297 = vmul.f32 %v295, 10.0
    %v298 = vpack.c.bf16 %v297, %v297
    %299 = vst [vmem:[#allocation9] sm:$0xf] %v298
    // Predicated region
    $region34: #{tpu_custom_call.1} parent=1 // pred_check
      _
    $region35: #{tpu_custom_call.1} parent=1 // pred_check_branch
      %301 = sbr.rel (0) target = $region37
    $region36: #{tpu_custom_call.1} parent=1 // pred_region
      %s303 = ssub.s32 128, 128
      %304 = vsyncadd [#allocation4], %s303
      %s306 = sshll.u32 [#allocation8], 4
      %s307 = int_to_ptr.vmem [resolvable:$true] %s306
      %309 = dma.vmem_to_hbm [thread:$0]  %s307, 128, %s5, [#allocation4]
    $region37: #{tpu_custom_call.1} parent=1 // pred_fallthru
      _
    // Predicated region
    $region38: #{tpu_custom_call.1} parent=1 // pred_check
      _
    $region39: #{tpu_custom_call.1} parent=1 // pred_check_branch
      %311 = sbr.rel (0) target = $region41
    $region40: #{tpu_custom_call.1} parent=1 // pred_region
      %s313 = ssub.s32 64, 64
      %314 = vsyncadd [#allocation10], %s313
      %s316 = sshll.u32 [#allocation9], 4
      %s317 = int_to_ptr.vmem [resolvable:$true] %s316
      %319 = dma.vmem_to_hbm [thread:$0]  %s317, 64, %s6, [#allocation10]
    $region41: #{tpu_custom_call.1} parent=1 // pred_fallthru
      _
    // Predicated region
    $region42: #{tpu_custom_call.1} parent=1 // pred_check
      _
    $region43: #{tpu_custom_call.1} parent=1 // pred_check_branch
      %321 = sbr.rel (0) target = $region45
    $region44: #{tpu_custom_call.1} parent=1 // pred_region
      %322 = dma.done [#allocation4], 128
    $region45: #{tpu_custom_call.1} parent=1 // pred_fallthru
      _
    // Predicated region
    $region46: #{tpu_custom_call.1} parent=1 // pred_check
      _
    $region47: #{tpu_custom_call.1} parent=1 // pred_check_branch
      %324 = sbr.rel (0) target = $region49
    $region48: #{tpu_custom_call.1} parent=1 // pred_region
      %325 = dma.done [#allocation10], 64
    $region49: #{tpu_custom_call.1} parent=1 // pred_fallthru
      _
    %326 = vsyncpa [#allocation3], 1
    %327 = vsyncpa [#allocation6], 1
    %328 = vsyncpa [#allocation4], 1
    %329 = vsyncpa [#allocation10], 1

</llo_original>
